<compile_context>
chip_gen: v5e
topology: v5e:2x2
jax: 0.10.0
libtpu: 0.0.40
codegen_flags: <defaults>
</compile_context>

<pallas_src>
import functools

import jax
import jax.numpy as jnp
from jax.experimental import pallas as pl
from jax.experimental.pallas import tpu as pltpu

_ELEM = 4                   # bytes of the f32 compute dtype in VMEM
_BLOCK_BUDGET = 32 << 20    # max bytes of double-buffered x/y blocks (1-pass)
_VMEM_CAP = 48 << 20        # stay inside v7x's 64 MiB physical VMEM


# ----------------------------- kernels --------------------------------------

def _se_fused_kernel(x_ref, w1t_ref, b1_ref, w2t_ref, b2_ref, o_ref):
    """Single-pass SE. x_ref/o_ref: (Bt, C, HW), NCHW flattened (HW on lanes)."""
    x = x_ref[...].astype(jnp.float32)                   # f32 accumulation
    inv_hw = 1.0 / x.shape[2]
    pooled = jnp.sum(x, axis=2) * inv_hw                 # (Bt, C)  squeeze
    h = jnp.dot(pooled, w1t_ref[...],
                preferred_element_type=jnp.float32) + b1_ref[...]
    h = jnp.maximum(h, 0.0)
    s = jnp.dot(h, w2t_ref[...],
                preferred_element_type=jnp.float32) + b2_ref[...]
    s = jax.nn.sigmoid(s)                                # (Bt, C) gate
    o_ref[...] = (x * s[:, :, None]).astype(o_ref.dtype)


def _pool_kernel(x_ref, sum_ref):
    """Two-pass fallback, pass 1: spatial sum over HW tiles (grid-resident)."""
    @pl.when(pl.program_id(1) == 0)
    def _():
        sum_ref[...] = jnp.zeros_like(sum_ref)
    sum_ref[...] += jnp.sum(x_ref[...].astype(jnp.float32), axis=2,
                            keepdims=True)


def _scale_kernel(x_ref, gate_ref, o_ref):
    """Two-pass fallback, pass 2: per-channel rescale of an HW tile."""
    o_ref[...] = (x_ref[...].astype(jnp.float32) * gate_ref[...]).astype(o_ref.dtype)


# ----------------------------- sizing helpers --------------------------------

def _vmem_limit(block_bytes):
    # Actual footprint + headroom; floor = v5e default, cap fits v7x physical.
    return int(max(16 << 20, min(_VMEM_CAP, 2 * block_bytes + (4 << 20))))


def _pick_bt(B, HW, C, max_block_bytes):
    """Largest batch-fusion factor whose in+out double-buffered blocks fit,
    keeping >= 2 grid steps for the megacore-parallel axis when B >= 2."""
    best = 1
    for bt in range(1, B + 1):
        if B % bt:
            continue
        if 4 * bt * HW * C * _ELEM > max_block_bytes:
            continue
        if B >= 2 and B // bt < 2:
            continue
        best = bt
    return best


def _pick_hw_tile(HW, C, max_block_bytes):
    """Lane-axis (HW) tile: multiple of 128 (or full HW when HW <= 128)."""
    if HW <= 128:
        return HW
    lanes = max_block_bytes // (4 * C * _ELEM)
    lanes = max(128, min(lanes, HW))
    return (lanes // 128) * 128


# ----------------------------- wrappers ---------------------------------------

def _se_single_pass(x_flat, w1, b1, w2, b2, max_block_bytes):
    B, C, HW = x_flat.shape
    Cr = w1.shape[0]
    Bt = _pick_bt(B, HW, C, max_block_bytes)

    # Row-vector orientation: pre-transpose weights, lane-dense biases.
    w1t = jnp.transpose(w1)              # (C, Cr)
    w2t = jnp.transpose(w2)              # (Cr, C)
    b1r = b1.reshape(1, Cr)
    b2r = b2.reshape(1, C)

    block_bytes = 4 * Bt * HW * C * _ELEM          # x + y, double-buffered
    weight_bytes = 4 * (2 * C * Cr + C + Cr) * _ELEM
    cost = pl.CostEstimate(
        flops=4 * B * HW * C + 4 * B * C * Cr,
        transcendentals=B * C,
        bytes_accessed=2 * B * HW * C * x_flat.dtype.itemsize)

    return pl.pallas_call(
        _se_fused_kernel,
        out_shape=jax.ShapeDtypeStruct((B, C, HW), x_flat.dtype),
        grid_spec=pltpu.PrefetchScalarGridSpec(
            num_scalar_prefetch=0,
            grid=(B // Bt,),
            in_specs=[
                pl.BlockSpec((Bt, C, HW), lambda g: (g, 0, 0)),
                pl.BlockSpec((C, Cr), lambda g: (0, 0)),
                pl.BlockSpec((1, Cr), lambda g: (0, 0)),
                pl.BlockSpec((Cr, C), lambda g: (0, 0)),
                pl.BlockSpec((1, C), lambda g: (0, 0)),
            ],
            out_specs=pl.BlockSpec((Bt, C, HW), lambda g: (g, 0, 0)),
        ),
        input_output_aliases={0: 0},
        cost_estimate=cost,
        compiler_params=pltpu.CompilerParams(
            dimension_semantics=("parallel",),
            vmem_limit_bytes=_vmem_limit(block_bytes + weight_bytes)),
    )(x_flat, w1t, b1r, w2t, b2r)


def _se_two_pass(x_flat, w1, b1, w2, b2, max_block_bytes):
    """Fallback when a full (C, HW) slab does not fit the VMEM budget."""
    B, C, HW = x_flat.shape
    tile = _pick_hw_tile(HW, C, max_block_bytes)
    HW_pad = pl.cdiv(HW, tile) * tile
    if HW_pad != HW:
        # Zero padding on the lane axis: contributes nothing to the sums and
        # the padded output columns are sliced off below.
        x_flat = jnp.pad(x_flat, ((0, 0), (0, 0), (0, HW_pad - HW)))
    n_tiles = HW_pad // tile

    # Pass 1: per-(batch, channel) spatial sums, f32 accumulation.
    pooled = pl.pallas_call(
        _pool_kernel,
        out_shape=jax.ShapeDtypeStruct((B, C, 1), jnp.float32),
        grid_spec=pltpu.PrefetchScalarGridSpec(
            num_scalar_prefetch=0,
            grid=(B, n_tiles),
            in_specs=[pl.BlockSpec((1, C, tile), lambda b, t: (b, 0, t))],
            out_specs=pl.BlockSpec((1, C, 1), lambda b, t: (b, 0, 0)),
        ),
        cost_estimate=pl.CostEstimate(
            flops=B * HW_pad * C, transcendentals=0,
            bytes_accessed=B * HW_pad * C * x_flat.dtype.itemsize),
        compiler_params=pltpu.CompilerParams(
            dimension_semantics=("parallel", "arbitrary"),
            vmem_limit_bytes=_vmem_limit(2 * tile * C * _ELEM)),
    )(x_flat)

    # Tiny gate MLP in plain XLA (negligible compute).
    mean = pooled[:, :, 0] * (1.0 / HW)          # true HW; padded lanes are zero
    h = jnp.maximum(mean @ jnp.transpose(w1).astype(jnp.float32) + b1, 0.0)
    gate = jax.nn.sigmoid(h @ jnp.transpose(w2).astype(jnp.float32) + b2)
    gate = gate.reshape(B, C, 1).astype(jnp.float32)

    # Pass 2: HW-tiled rescale, aliased in place over x.
    out = pl.pallas_call(
        _scale_kernel,
        out_shape=jax.ShapeDtypeStruct((B, C, HW_pad), x_flat.dtype),
        grid_spec=pltpu.PrefetchScalarGridSpec(
            num_scalar_prefetch=0,
            grid=(B, n_tiles),
            in_specs=[pl.BlockSpec((1, C, tile), lambda b, t: (b, 0, t)),
                      pl.BlockSpec((1, C, 1), lambda b, t: (b, 0, 0))],
            out_specs=pl.BlockSpec((1, C, tile), lambda b, t: (b, 0, t)),
        ),
        input_output_aliases={0: 0},
        cost_estimate=pl.CostEstimate(
            flops=B * HW_pad * C, transcendentals=0,
            bytes_accessed=2 * B * HW_pad * C * x_flat.dtype.itemsize),
        compiler_params=pltpu.CompilerParams(
            dimension_semantics=("parallel", "parallel"),
            vmem_limit_bytes=_vmem_limit(4 * tile * C * _ELEM)),
    )(x_flat, gate)
    return out[:, :, :HW]


def se_module(x, w1, b1, w2, b2, *, max_block_bytes=_BLOCK_BUDGET):
    """x: (B, C, H, W). Conv2d-1x1 weights as matrices:
       w1: (C//r, C), b1: (C//r,), w2: (C, C//r), b2: (C,)."""
    B, C, H, W = x.shape
    HW = H * W
    x_flat = x.reshape(B, C, HW)          # free reshape, stays NCHW in HBM
    if 4 * HW * C * _ELEM <= max_block_bytes:
        out = _se_single_pass(x_flat, w1, b1, w2, b2, max_block_bytes)
    else:
        out = _se_two_pass(x_flat, w1, b1, w2, b2, max_block_bytes)
    return out.reshape(B, C, H, W)


def se_module_ref(x, w1, b1, w2, b2):
    # Pure-JAX reference of the PyTorch SEModule forward.
    mean = jnp.mean(x, axis=(2, 3))                       # (B, C)
    h = jnp.maximum(mean @ w1.T + b1, 0.0)                # (B, Cr)
    s = jax.nn.sigmoid(h @ w2.T + b2)                     # (B, C)
    return x * s[:, :, None, None]


if __name__ == "__main__":
    B, C, H, W = 2, 4, 16, 16
    reduction = 2
    Cr = C // reduction

    key = jax.random.PRNGKey(0)
    kx, k1, k2, k3, k4, kx2 = jax.random.split(key, 6)

    x = jax.random.normal(kx, (B, C, H, W), dtype=jnp.float32)
    w1 = jax.random.normal(k1, (Cr, C), dtype=jnp.float32) * 0.1
    b1 = jax.random.normal(k2, (Cr,), dtype=jnp.float32) * 0.1
    w2 = jax.random.normal(k3, (C, Cr), dtype=jnp.float32) * 0.1
    b2 = jax.random.normal(k4, (C,), dtype=jnp.float32) * 0.1

    y_ref = se_module_ref(x, w1, b1, w2, b2)

    # Default path: single fused, batch-tiled, NCHW-resident kernel.
    y1 = jax.block_until_ready(jax.jit(se_module)(x, w1, b1, w2, b2))
    assert jnp.allclose(y1, y_ref, atol=1e-5, rtol=1e-5), "fused path mismatch"

    # Force the HW-tiled two-pass fallback (big-feature-map / v7x VMEM guard)
    # with a tiny block budget to exercise that code path.
    two_pass = jax.jit(functools.partial(se_module, max_block_bytes=4096))
    y2 = jax.block_until_ready(two_pass(x, w1, b1, w2, b2))
    assert jnp.allclose(y2, y_ref, atol=1e-5, rtol=1e-5), "two-pass path mismatch"

    # Two-pass again with HW (=324) not a multiple of the 128-lane tile so the
    # zero-padded tail path is exercised as well.
    x_odd = jax.random.normal(kx2, (B, C, 18, 18), dtype=jnp.float32)
    y3 = jax.block_until_ready(two_pass(x_odd, w1, b1, w2, b2))
    y3_ref = se_module_ref(x_odd, w1, b1, w2, b2)
    assert jnp.allclose(y3, y3_ref, atol=1e-5, rtol=1e-5), "padded two-pass mismatch"

    print("KERNEL_OK")
</pallas_src>

<mosaic_0001>
module attributes {stable_mosaic.version = 11 : i64} {
  func.func @_se_fused_kernel(%arg0: i32, %arg1: memref<1x4x256xf32, #tpu.memory_space<vmem>>, %arg2: memref<4x2xf32, #tpu.memory_space<vmem>>, %arg3: memref<1x2xf32, #tpu.memory_space<vmem>>, %arg4: memref<2x4xf32, #tpu.memory_space<vmem>>, %arg5: memref<1x4xf32, #tpu.memory_space<vmem>>, %arg6: memref<1x4x256xf32, #tpu.memory_space<vmem>>) attributes {dimension_semantics = [#tpu.dimension_semantics<parallel>], iteration_bounds = array<i64: 2>, scalar_prefetch = 0 : i64, scratch_operands = 0 : i64, tpu.core_type = #tpu.core_type<tc>, window_params = [{transform_indices = @transform_0, window_bounds = array<i64: 1, 4, 256>}, {pipeline_mode = #tpu.pipeline_mode<synchronous>, transform_indices = @transform_1, window_bounds = array<i64: 4, 2>}, {pipeline_mode = #tpu.pipeline_mode<synchronous>, transform_indices = @transform_2, window_bounds = array<i64: 1, 2>}, {pipeline_mode = #tpu.pipeline_mode<synchronous>, transform_indices = @transform_3, window_bounds = array<i64: 2, 4>}, {pipeline_mode = #tpu.pipeline_mode<synchronous>, transform_indices = @transform_4, window_bounds = array<i64: 1, 4>}, {transform_indices = @transform_5, window_bounds = array<i64: 1, 4, 256>}]} {
    %c0 = arith.constant 0 : index
    %c0_0 = arith.constant 0 : index
    %c0_1 = arith.constant 0 : index
    %0 = vector.load %arg1[%c0, %c0_0, %c0_1] : memref<1x4x256xf32, #tpu.memory_space<vmem>>, vector<1x4x256xf32>
    %cst = arith.constant dense<0.000000e+00> : vector<1x4xf32>
    %1 = vector.multi_reduction <add>, %0, %cst [2] : vector<1x4x256xf32> to vector<1x4xf32>
    %cst_2 = arith.constant 3.906250e-03 : f32
    %2 = vector.broadcast %cst_2 : f32 to vector<1x4xf32>
    %3 = arith.mulf %1, %2 : vector<1x4xf32>
    %c0_3 = arith.constant 0 : index
    %c0_4 = arith.constant 0 : index
    %4 = vector.load %arg2[%c0_3, %c0_4] : memref<4x2xf32, #tpu.memory_space<vmem>>, vector<4x2xf32>
    %cst_5 = arith.constant dense<0.000000e+00> : vector<1x2xf32>
    %5 = tpu.matmul %3, %4, %cst_5 {dimension_numbers = #tpu.dot_dimension_numbers<[1], [0], [0], [1], [0, 0, 1, 1], [], []>} : vector<1x4xf32>, vector<4x2xf32>, vector<1x2xf32> -> vector<1x2xf32>
    %c0_6 = arith.constant 0 : index
    %c0_7 = arith.constant 0 : index
    %6 = vector.load %arg3[%c0_6, %c0_7] : memref<1x2xf32, #tpu.memory_space<vmem>>, vector<1x2xf32>
    %7 = arith.addf %5, %6 : vector<1x2xf32>
    %cst_8 = arith.constant 0.000000e+00 : f32
    %8 = vector.broadcast %cst_8 : f32 to vector<1x2xf32>
    %9 = arith.maximumf %7, %8 : vector<1x2xf32>
    %c0_9 = arith.constant 0 : index
    %c0_10 = arith.constant 0 : index
    %10 = vector.load %arg4[%c0_9, %c0_10] : memref<2x4xf32, #tpu.memory_space<vmem>>, vector<2x4xf32>
    %cst_11 = arith.constant dense<0.000000e+00> : vector<1x4xf32>
    %11 = tpu.matmul %9, %10, %cst_11 {dimension_numbers = #tpu.dot_dimension_numbers<[1], [0], [0], [1], [0, 0, 1, 1], [], []>} : vector<1x2xf32>, vector<2x4xf32>, vector<1x4xf32> -> vector<1x4xf32>
    %c0_12 = arith.constant 0 : index
    %c0_13 = arith.constant 0 : index
    %12 = vector.load %arg5[%c0_12, %c0_13] : memref<1x4xf32, #tpu.memory_space<vmem>>, vector<1x4xf32>
    %13 = arith.addf %11, %12 : vector<1x4xf32>
    %14 = arith.negf %13 : vector<1x4xf32>
    %15 = math.exp %14 : vector<1x4xf32>
    %cst_14 = arith.constant 1.000000e+00 : f32
    %16 = vector.broadcast %cst_14 : f32 to vector<1x4xf32>
    %17 = arith.addf %16, %15 : vector<1x4xf32>
    %18 = arith.divf %16, %17 : vector<1x4xf32>
    %19 = vector.shape_cast %18 : vector<1x4xf32> to vector<1x4x1xf32>
    %20 = vector.broadcast %19 : vector<1x4x1xf32> to vector<1x4x256xf32>
    %21 = arith.mulf %0, %20 : vector<1x4x256xf32>
    %c0_15 = arith.constant 0 : index
    %c0_16 = arith.constant 0 : index
    %c0_17 = arith.constant 0 : index
    %22 = vector.load %arg6[%c0_15, %c0_16, %c0_17] : memref<1x4x256xf32, #tpu.memory_space<vmem>>, vector<1x4x256xf32>
    tpu.vector_store %arg6[%c0_15, %c0_16, %c0_17], %21 {strides = array<i32>} : memref<1x4x256xf32, #tpu.memory_space<vmem>>, vector<1x4x256xf32>,
    return
  }
  func.func @transform_0(%arg0: i32) -> (i32, i32, i32) {
    %c0_i32 = arith.constant 0 : i32
    %c0_i32_0 = arith.constant 0 : i32
    %c0_i32_1 = arith.constant 0 : i32
    return %arg0, %c0_i32, %c0_i32_0 : i32, i32, i32
  }
  func.func @transform_1(%arg0: i32) -> (i32, i32) {
    %c0_i32 = arith.constant 0 : i32
    %c0_i32_0 = arith.constant 0 : i32
    %c0_i32_1 = arith.constant 0 : i32
    return %c0_i32, %c0_i32_0 : i32, i32
  }
  func.func @transform_2(%arg0: i32) -> (i32, i32) {
    %c0_i32 = arith.constant 0 : i32
    %c0_i32_0 = arith.constant 0 : i32
    %c0_i32_1 = arith.constant 0 : i32
    return %c0_i32, %c0_i32_0 : i32, i32
  }
  func.func @transform_3(%arg0: i32) -> (i32, i32) {
    %c0_i32 = arith.constant 0 : i32
    %c0_i32_0 = arith.constant 0 : i32
    %c0_i32_1 = arith.constant 0 : i32
    return %c0_i32, %c0_i32_0 : i32, i32
  }
  func.func @transform_4(%arg0: i32) -> (i32, i32) {
    %c0_i32 = arith.constant 0 : i32
    %c0_i32_0 = arith.constant 0 : i32
    %c0_i32_1 = arith.constant 0 : i32
    return %c0_i32, %c0_i32_0 : i32, i32
  }
  func.func @transform_5(%arg0: i32) -> (i32, i32, i32) {
    %c0_i32 = arith.constant 0 : i32
    %c0_i32_0 = arith.constant 0 : i32
    %c0_i32_1 = arith.constant 0 : i32
    return %arg0, %c0_i32, %c0_i32_0 : i32, i32, i32
  }
}

</mosaic_0001>

<llo_original>
// kernel: se_module.1
$region0: #{se_module.1}
  #allocation0 [shape = 'u32[]', space=smem, size = 0x4, offset = 0x4, fixed_abs, tag = 'smem constant byte address 0x4 - core index']
  #allocation1 [shape = 'u32[72,128]{1,0:T(1,128)}', space=vmem, size = 0x9000, scoped, tag = 'internal scratch']
  %s0 = inlined_call_operand.vmem [shape: f32[2,4,256], index: 0, kind: input, shape index: {}, may-alias: {0,5}]
  %s1 = inlined_call_operand.vmem [shape: f32[4,2], index: 1, kind: input, shape index: {}]
  %s2 = inlined_call_operand.vmem [shape: f32[1,2], index: 2, kind: input, shape index: {}]
  %s3 = inlined_call_operand.vmem [shape: f32[2,4], index: 3, kind: input, shape index: {}]
  %s4 = inlined_call_operand.vmem [shape: f32[1,4], index: 4, kind: input, shape index: {}]
  %s5 = inlined_call_operand.vmem [shape: f32[2,4,256], index: 5, kind: output, shape index: {}, may-alias: {0,5}]
  %s6 = sld [smem:[#allocation0]]
  $region53: #{se_module.1} parent=0
    _
  %s8 = ssub.s32 1, %s6
  %s9 = scalar_select 0, %s8, %s6
  loop: start=0, step=1, limit=4
  $region2: #{se_module.1} parent=0 // loop_pre_header
    _
  $region3: #{se_module.1} parent=0 // loop_header
    %s11 = sphi 0, %s15
    %p12 = scmp.ge.s32.totalorder %s11, 4
    %s21 = sphi 0, %s23
    %s24 = sphi 0, %s21
    %s25 = sphi 0, %s24
    %s41 = sphi 0, %s25
    %s45 = sphi 0, %s45
    %s47 = sphi 0, %s45
    %s48 = sphi 0, %s47
    %s62 = sphi 0, %s48
    %s66 = sphi 0, %s66
    %s68 = sphi 0, %s66
    %s69 = sphi 0, %s68
    %s83 = sphi 0, %s69
    %s87 = sphi 0, %s87
    %s89 = sphi 0, %s87
    %s90 = sphi 0, %s89
    %s104 = sphi 0, %s90
    %s108 = sphi 0, %s108
    %s110 = sphi 0, %s108
    %s111 = sphi 0, %s110
    %s125 = sphi 0, %s111
    %s131 = sphi 0, %s133
    %s134 = sphi 0, %s131
    %s135 = sphi 0, %s134
    %s151 = sphi 0, %s135
  $region4: #{se_module.1} parent=0 // loop_header_branch
    %14 = sbr.rel (%p12) target = $region8
  $region5: #{se_module.1} parent=0 // loop_body
    %s16 = ssub.s32 %s11, 1
    %s17 = ssub.s32 %s11, 2
    %s18 = sadd.s32 %s11, 1
    %s19 = ssub.s32 %s11, %s18
    %p20 = scmp.eq.s32.totalorder %s19, 0
    %s22 = sadd.s32 %s21, 1
    %s23 = scalar_select %p20, %s21, %s22
    %p26 = pneg %p20
    %p27 = scmp.eq.s32.totalorder %s11, 1
    %p28 = por %p26, %p27
    %p29 = scmp.ne.s32.totalorder %s21, %s24
    %p30 = scmp.eq.s32.totalorder %s11, 0
    %p31 = por %p29, %p30
    %p32 = scmp.ne.s32.totalorder %s21, %s24
    %p33 = scmp.eq.s32.totalorder %s16, 1
    %p34 = por %p32, %p33
    %p35 = scmp.ne.s32.totalorder %s24, %s25
    %p36 = scmp.eq.s32.totalorder %s16, 0
    %p37 = por %p35, %p36
    %p38 = scmp.ne.s32.totalorder %s24, %s25
    %p39 = scmp.eq.s32.totalorder %s17, 1
    %p40 = por %p38, %p39
    %p42 = scmp.ne.s32.totalorder %s25, %s41
    %p43 = scmp.eq.s32.totalorder %s17, 0
    %p44 = por %p42, %p43
    %s46 = sadd.s32 %s45, 1
    %p49 = scmp.eq.s32.totalorder %s11, 1
    %p50 = scmp.ne.s32.totalorder %s45, %s47
    %p51 = scmp.eq.s32.totalorder %s11, 0
    %p52 = por %p50, %p51
    %p53 = scmp.ne.s32.totalorder %s45, %s47
    %p54 = scmp.eq.s32.totalorder %s16, 1
    %p55 = por %p53, %p54
    %p56 = scmp.ne.s32.totalorder %s47, %s48
    %p57 = scmp.eq.s32.totalorder %s16, 0
    %p58 = por %p56, %p57
    %p59 = scmp.ne.s32.totalorder %s47, %s48
    %p60 = scmp.eq.s32.totalorder %s17, 1
    %p61 = por %p59, %p60
    %p63 = scmp.ne.s32.totalorder %s48, %s62
    %p64 = scmp.eq.s32.totalorder %s17, 0
    %p65 = por %p63, %p64
    %s67 = sadd.s32 %s66, 1
    %p70 = scmp.eq.s32.totalorder %s11, 1
    %p71 = scmp.ne.s32.totalorder %s66, %s68
    %p72 = scmp.eq.s32.totalorder %s11, 0
    %p73 = por %p71, %p72
    %p74 = scmp.ne.s32.totalorder %s66, %s68
    %p75 = scmp.eq.s32.totalorder %s16, 1
    %p76 = por %p74, %p75
    %p77 = scmp.ne.s32.totalorder %s68, %s69
    %p78 = scmp.eq.s32.totalorder %s16, 0
    %p79 = por %p77, %p78
    %p80 = scmp.ne.s32.totalorder %s68, %s69
    %p81 = scmp.eq.s32.totalorder %s17, 1
    %p82 = por %p80, %p81
    %p84 = scmp.ne.s32.totalorder %s69, %s83
    %p85 = scmp.eq.s32.totalorder %s17, 0
    %p86 = por %p84, %p85
    %s88 = sadd.s32 %s87, 1
    %p91 = scmp.eq.s32.totalorder %s11, 1
    %p92 = scmp.ne.s32.totalorder %s87, %s89
    %p93 = scmp.eq.s32.totalorder %s11, 0
    %p94 = por %p92, %p93
    %p95 = scmp.ne.s32.totalorder %s87, %s89
    %p96 = scmp.eq.s32.totalorder %s16, 1
    %p97 = por %p95, %p96
    %p98 = scmp.ne.s32.totalorder %s89, %s90
    %p99 = scmp.eq.s32.totalorder %s16, 0
    %p100 = por %p98, %p99
    %p101 = scmp.ne.s32.totalorder %s89, %s90
    %p102 = scmp.eq.s32.totalorder %s17, 1
    %p103 = por %p101, %p102
    %p105 = scmp.ne.s32.totalorder %s90, %s104
    %p106 = scmp.eq.s32.totalorder %s17, 0
    %p107 = por %p105, %p106
    %s109 = sadd.s32 %s108, 1
    %p112 = scmp.eq.s32.totalorder %s11, 1
    %p113 = scmp.ne.s32.totalorder %s108, %s110
    %p114 = scmp.eq.s32.totalorder %s11, 0
    %p115 = por %p113, %p114
    %p116 = scmp.ne.s32.totalorder %s108, %s110
    %p117 = scmp.eq.s32.totalorder %s16, 1
    %p118 = por %p116, %p117
    %p119 = scmp.ne.s32.totalorder %s110, %s111
    %p120 = scmp.eq.s32.totalorder %s16, 0
    %p121 = por %p119, %p120
    %p122 = scmp.ne.s32.totalorder %s110, %s111
    %p123 = scmp.eq.s32.totalorder %s17, 1
    %p124 = por %p122, %p123
    %p126 = scmp.ne.s32.totalorder %s111, %s125
    %p127 = scmp.eq.s32.totalorder %s17, 0
    %p128 = por %p126, %p127
    %s129 = ssub.s32 %s11, %s18
    %p130 = scmp.eq.s32.totalorder %s129, 0
    %s132 = sadd.s32 %s131, 1
    %s133 = scalar_select %p130, %s131, %s132
    %p136 = pneg %p130
    %p137 = scmp.eq.s32.totalorder %s11, 1
    %p138 = por %p136, %p137
    %p139 = scmp.ne.s32.totalorder %s131, %s134
    %p140 = scmp.eq.s32.totalorder %s11, 0
    %p141 = por %p139, %p140
    %p142 = scmp.ne.s32.totalorder %s131, %s134
    %p143 = scmp.eq.s32.totalorder %s16, 1
    %p144 = por %p142, %p143
    %p145 = scmp.ne.s32.totalorder %s134, %s135
    %p146 = scmp.eq.s32.totalorder %s16, 0
    %p147 = por %p145, %p146
    %p148 = scmp.ne.s32.totalorder %s134, %s135
    %p149 = scmp.eq.s32.totalorder %s17, 1
    %p150 = por %p148, %p149
    %p152 = scmp.ne.s32.totalorder %s135, %s151
    %p153 = scmp.eq.s32.totalorder %s17, 0
    %p154 = por %p152, %p153
    %p155 = scmp.le.s32.totalorder 1, %s11
    %p156 = scmp.lt.s32.totalorder %s11, 3
    %p157 = pnand %p155, %p156
    %p158 = pneg %p157
    // Predicated region
    $region9: #{se_module.1} parent=5 // pred_check
      _
    $region10: #{se_module.1} parent=5 // pred_check_branch
      %160 = sbr.rel (%p157) target = $region12
    $region11: #{se_module.1} parent=5 // pred_region
      %s161 = ssub.s32 %s11, 1
      // Predicated region
      $region13: #{se_module.1} parent=11 // pred_check
        %p162 = pneg %p58
      $region14: #{se_module.1} parent=11 // pred_check_branch
        %164 = sbr.rel (%p162) target = $region16
      $region15: #{se_module.1} parent=11 // pred_region
        _
      $region16: #{se_module.1} parent=11 // pred_fallthru
        _
      // Predicated region
      $region17: #{se_module.1} parent=11 // pred_check
        %p165 = pneg %p79
      $region18: #{se_module.1} parent=11 // pred_check_branch
        %167 = sbr.rel (%p165) target = $region20
      $region19: #{se_module.1} parent=11 // pred_region
        _
      $region20: #{se_module.1} parent=11 // pred_fallthru
        _
      // Predicated region
      $region21: #{se_module.1} parent=11 // pred_check
        %p168 = pneg %p100
      $region22: #{se_module.1} parent=11 // pred_check_branch
        %170 = sbr.rel (%p168) target = $region24
      $region23: #{se_module.1} parent=11 // pred_region
        _
      $region24: #{se_module.1} parent=11 // pred_fallthru
        _
      // Predicated region
      $region25: #{se_module.1} parent=11 // pred_check
        %p171 = pneg %p121
      $region26: #{se_module.1} parent=11 // pred_check_branch
        %173 = sbr.rel (%p171) target = $region28
      $region27: #{se_module.1} parent=11 // pred_region
        _
      $region28: #{se_module.1} parent=11 // pred_fallthru
        _
    $region12: #{se_module.1} parent=5 // pred_fallthru
      _
    %p174 = scmp.lt.s32.totalorder %s11, 2
    // Predicated region
    $region29: #{se_module.1} parent=5 // pred_check
      %p175 = pneg %p174
    $region30: #{se_module.1} parent=5 // pred_check_branch
      %177 = sbr.rel (%p175) target = $region32
    $region31: #{se_module.1} parent=5 // pred_region
      // Predicated region
      $region33: #{se_module.1} parent=31 // pred_check
        %p178 = pneg %p31
      $region34: #{se_module.1} parent=31 // pred_check_branch
        %180 = sbr.rel (%p178) target = $region36
      $region35: #{se_module.1} parent=31 // pred_region
        %p181 = scmp.lt.s32.totalorder %s11, 1
        %s182 = scalar_select %p181, %s11, 1
        %s183 = smul.addr %s182, 2
        %s184 = smul.addr %s183, 4
        %s185 = scalar_lea.vmem %s0, %s184
      $region36: #{se_module.1} parent=31 // pred_fallthru
        _
    $region32: #{se_module.1} parent=5 // pred_fallthru
      _
    %p186 = scmp.le.s32.totalorder 1, %s11
    %p187 = scmp.lt.s32.totalorder %s11, 3
    %p188 = pnand %p186, %p187
    %p189 = pneg %p188
    // Predicated region
    $region37: #{se_module.1} parent=5 // pred_check
      _
    $region38: #{se_module.1} parent=5 // pred_check_branch
      %191 = sbr.rel (%p188) target = $region40
    $region39: #{se_module.1} parent=5 // pred_region
      %s192 = ssub.s32 %s11, 1
      %p193 = scmp.lt.s32.totalorder %s16, 1
      %s194 = scalar_select %p193, %s16, 1
      %s195 = smul.addr %s194, 2
      %s196 = smul.addr %s195, 4
      %s197 = scalar_lea.vmem %s0, %s196
      %p198 = pneg %p37
      %p199 = pneg %p34
      %p200 = pneg %p58
      %p201 = pneg %p55
      %p202 = pneg %p79
      %p203 = pneg %p76
      %p204 = pneg %p100
      %p205 = pneg %p97
      %p206 = pneg %p121
      %p207 = pneg %p118
      %p208 = pneg %p147
      %p209 = pneg %p144
      %p210 = scmp.lt.s32.totalorder %s16, 1
      %s211 = scalar_select %p210, %s16, 1
      %s212 = smul.addr %s211, 2
      %s213 = smul.addr %s212, 4
      %s214 = scalar_lea.vmem %s5, %s213
      %p215 = scmp.lt.s32.totalorder %s16, 1
      %s216 = scalar_select %p215, %s16, 1
      %s217 = smul.addr %s216, 2
      %s218 = smul.addr %s217, 4
      %s219 = scalar_lea.vmem %s0, %s218
      %p220 = scmp.lt.s32.totalorder %s16, 1
      %s221 = scalar_select %p220, %s16, 1
      %s222 = smul.addr %s221, 2
      %s223 = smul.addr %s222, 4
      %s224 = scalar_lea.vmem %s5, %s223
      %v225 = vld [vmem:[%s219] sm:$0xff]
      %227 = vst [vmem:[#allocation1] ss:$2 sm:$0xff] %v225
      %v228 = vld.sshfl [vmem:[#allocation1] sm:$0xff pattern:$0x75316420]
      %v229 = vld.sshfl [vmem:[#allocation1 + $0x8] sm:$0xff pattern:$0x75316420]
      %vm232 = vcmask 1043456
      %v233 = vsel %vm232, %v228, 0.0
      %v234 = vsel %vm232, %v229, 0.0
      %v235 = vadd.f32 %v233, %v234
      %236 = vadd.xlane.f32.xlu0 %v235
      %v237 = vpop.xlane.xlu0 %236
      %v238 = vmul.f32 %v237, 0.00390625
      %v239 = vld [vmem:[%s1] sm:$0xf]
      %v240 = vld [vmem:[%s2] sm:$0x1]
      %v242 = vlaneseq
      %v243 = vand.u32 %v242, 127
      %v244 = vperm.slane %v238, %v243
      %vm245 = vcmask 31744
      %v246 = vsel %vm245, %v244, 0
      %v249 = vsel %vm232, %v239, 0
      %251 = vmatpush.msra.mxu0 0.0
      %252 = vmatpush.msra.mxu0 0.0
      %253 = vmatpush.msra.mxu0 0.0
      %254 = vmatpush.msra.mxu0 0.0
      %255 = vmatpush.msra.mxu0 0.0
      %256 = vmatpush.msra.mxu0 0.0
      %257 = vmatpush.msra.mxu0 0.0
      %258 = vmatpush.msra.mxu0 0.0
      %259 = vmatpush.msra.mxu0 0.0
      %260 = vmatpush.msra.mxu0 0.0
      %261 = vmatpush.msra.mxu0 0.0
      %262 = vmatpush.msra.mxu0 0.0
      %263 = vmatpush.msra.mxu0 0.0
      %264 = vmatpush.msra.mxu0 0.0
      %265 = vmatpush.msra.mxu0 0.0
      %266 = vmatpush.msra.mxu0 %v249
      %267 = vmatmul.f32.gmra.mxu0 %v246
      %v268 = vpop.f32.mrf.mxu0
      %v269 = vadd.f32 %v240, %v268
      %270 = vdwg.mxu0
      %v271 = vmax.f32 %v269, 0.0
      %v272 = vld [vmem:[%s3] sm:$0x3]
      %v273 = vld [vmem:[%s4] sm:$0x1]
      %vm274 = vcmask 15360
      %v276 = vsel %vm274, %v271, 0
      %vm278 = vcmask 1041408
      %v280 = vsel %vm278, %v272, 0
      %282 = vmatpush.msra.mxu0 0.0
      %283 = vmatpush.msra.mxu0 0.0
      %284 = vmatpush.msra.mxu0 0.0
      %285 = vmatpush.msra.mxu0 0.0
      %286 = vmatpush.msra.mxu0 0.0
      %287 = vmatpush.msra.mxu0 0.0
      %288 = vmatpush.msra.mxu0 0.0
      %289 = vmatpush.msra.mxu0 0.0
      %290 = vmatpush.msra.mxu0 0.0
      %291 = vmatpush.msra.mxu0 0.0
      %292 = vmatpush.msra.mxu0 0.0
      %293 = vmatpush.msra.mxu0 0.0
      %294 = vmatpush.msra.mxu0 0.0
      %295 = vmatpush.msra.mxu0 0.0
      %296 = vmatpush.msra.mxu0 0.0
      %297 = vmatpush.msra.mxu0 %v280
      %298 = vmatmul.f32.gmra.mxu0 %v276
      %v299 = vpop.f32.mrf.mxu0
      %v300 = vadd.f32 %v273, %v299
      %301 = vdwg.mxu0
      %v302 = vxor.u32 %v300, 2147483648
      %v303 = vmul.f32 %v302, 1.442695
      %v304 = vpow.pop %v303
      %v305 = vadd.f32 %v304, 1.0
      %v306 = vrcp.pop %v305
      %v307 = vmul.f32 %v305, %v306
      %v308 = vsub.f32 1.0, %v307
      %v309 = vmul.f32 %v306, %v308
      %v310 = vadd.f32 %v306, %v309
      %vm311 = vweird.f32 %v305
      %vm312 = vweird.f32 %v306
      %vm313 = vmor %vm311, %vm312
      %v314 = vsel %vm313, %v306, %v310
      %v315 = vand.u32 2147483647, %v305
      %vm316 = vcmp.eq.f32.partialorder %v315, 8.507059e+37
      %v317 = vand.u32 %v305, 2147483648
      %v318 = vor.u32 1.1754944e-38, %v317
      %v319 = vsel %vm316, %v318, %v314
      %v320 = vmul.f32 1.0, %v319
      %v321 = vperm.slane %v320, 0
      %v322 = vlaneseq
      %v323 = vshrl.u32 %v322, 7
      %325 = vset.pattern.permute.xlu0 %v323
      %326 = vperm.xlu0 %325, %v321
      %v327 = vpop.permute.xlu0 %326
      %v330 = vunpack.c.l.s4 839922192
      %v331 = vunpack.c.0.s8 %v330
      %v332 = vperm.slane %v327, %v331
      %v334 = vmul.f32 %v225, %v332
      %335 = vst [vmem:[%s224] sm:$0xff] %v334
      %p336 = scmp.lt.s32.totalorder %s16, 1
      %s337 = scalar_select %p336, %s16, 1
      %s338 = smul.addr %s337, 2
      %s339 = smul.addr %s338, 4
      %s340 = scalar_lea.vmem %s5, %s339
      // Predicated region
      $region41: #{se_module.1} parent=39 // pred_check
        %p341 = pneg %p144
      $region42: #{se_module.1} parent=39 // pred_check_branch
        %343 = sbr.rel (%p341) target = $region44
      $region43: #{se_module.1} parent=39 // pred_region
        _
      $region44: #{se_module.1} parent=39 // pred_fallthru
        _
    $region40: #{se_module.1} parent=5 // pred_fallthru
      _
    %p344 = scmp.le.s32.totalorder 2, %s11
    // Predicated region
    $region45: #{se_module.1} parent=5 // pred_check
      %p345 = pneg %p344
    $region46: #{se_module.1} parent=5 // pred_check_branch
      %347 = sbr.rel (%p345) target = $region48
    $region47: #{se_module.1} parent=5 // pred_region
      %s348 = ssub.s32 %s11, 2
      // Predicated region
      $region49: #{se_module.1} parent=47 // pred_check
        %p349 = pneg %p150
      $region50: #{se_module.1} parent=47 // pred_check_branch
        %351 = sbr.rel (%p349) target = $region52
      $region51: #{se_module.1} parent=47 // pred_region
        %p352 = scmp.lt.s32.totalorder %s17, 1
        %s353 = scalar_select %p352, %s17, 1
        %s354 = smul.addr %s353, 2
        %s355 = smul.addr %s354, 4
        %s356 = scalar_lea.vmem %s5, %s355
      $region52: #{se_module.1} parent=47 // pred_fallthru
        _
    $region48: #{se_module.1} parent=5 // pred_fallthru
      _
  $region6: #{se_module.1} parent=0 // loop_footer
    %s15 = sadd.s32 1, %s11
  $region7: #{se_module.1} parent=0 // loop_footer_branch
    %10 = sbr.rel target = $region3
  $region8: #{se_module.1} parent=0 // loop_exit
    _

</llo_original>
